<compile_context>
chip_gen: v5e
topology: v5e:2x2
jax: 0.10.0
libtpu: 0.0.40
codegen_flags: <defaults>
</compile_context>

<pallas_src>
import functools

import numpy as np
import jax
import jax.numpy as jnp
from jax import lax
from jax.experimental import pallas as pl
from jax.experimental.pallas import tpu as pltpu


# ----------------------------- Pallas kernel ------------------------------ #
def rnn_encoder_kernel(x_ref, wih_ref, whh_ref, b_ref, wlin_ref, blin_ref,
                       y_ref, *, T, B, H):
    # x_ref   : (T*B, D)   time-major input, flattened over (T, B)
    # wih_ref : (D, 4H)    input->gates weight (transposed torch W_ih)
    # whh_ref : (H, 4H)    hidden->gates weight (transposed torch W_hh)
    # b_ref   : (1, 4H)    b_ih + b_hh
    # wlin_ref: (H, O)     transposed torch linear weight
    # blin_ref: (1, O)
    # y_ref   : (B, O)
    whh = whh_ref[...]

    # Hoisted input projection + bias: one big matmul OFF the serial path.
    # Per-step loop body is now only h @ W_hh + elementwise.
    gates_x = (jnp.dot(x_ref[...], wih_ref[...],
                       preferred_element_type=jnp.float32)
               + b_ref[...])                                    # (T*B, 4H)

    # Static lane-group mask for the g-gate (lanes [2H, 3H)); hoisted out of
    # the loop so it is built exactly once.
    lane = lax.broadcasted_iota(jnp.int32, (B, 4 * H), 1)
    is_g_gate = (lane >= 2 * H) & (lane < 3 * H)

    h = jnp.zeros((B, H), jnp.float32)
    c = jnp.zeros((B, H), jnp.float32)

    # TODO(synk): W_hh could be held resident in MXU weight registers across
    # steps via pltpu.matmul_push_rhs/matmul_acc_lhs/matmul_pop; kept as plain
    # jnp.dot here for portability across v5e/v6e/v7x MXU result-path variants.
    #
    # Static unroll over T (small, fixed): static gates_x slices, and adjacent
    # steps' MXU / EUP / VPU ops can interleave in the VLIW bundles.
    for t in range(T):
        gates = gates_x[t * B:(t + 1) * B, :] + jnp.dot(
            h, whh, preferred_element_type=jnp.float32)         # (B, 4H)

        # Two full-vreg EUP activations + one lane-select instead of four
        # sub-vreg (32-lane) slices each feeding its own EUP call.
        act_sig = jax.nn.sigmoid(gates)
        act_tanh = jnp.tanh(gates)
        act = jnp.where(is_g_gate, act_tanh, act_sig)
        # act = [ sigmoid(i) | sigmoid(f) | tanh(g) | sigmoid(o) ]

        i_g = act[:, 0 * H:1 * H]
        f_g = act[:, 1 * H:2 * H]
        g_g = act[:, 2 * H:3 * H]
        o_g = act[:, 3 * H:4 * H]

        c = f_g * c + i_g * g_g
        h = o_g * jnp.tanh(c)

    # dropout is identity in eval mode; final linear projection on the MXU.
    y_ref[...] = (jnp.dot(h, wlin_ref[...],
                          preferred_element_type=jnp.float32)
                  + blin_ref[...])


# ------------------------------ Wrapper ----------------------------------- #
def rnn_encoder_forward(x, lengths, params):
    """x: (B, T, D) float32. lengths accepted and ignored (matches the
    PyTorch forward, which never packs by `lengths`)."""
    del lengths
    B, T, D = x.shape
    w_ih, w_hh, b_ih, b_hh, w_lin, b_lin = (
        params["w_ih"], params["w_hh"], params["b_ih"],
        params["b_hh"], params["w_lin"], params["b_lin"])
    H = w_hh.shape[1]
    O = w_lin.shape[0]

    # Glue: layout / parameter reshapes stay in plain JAX.
    # Time-major then flatten (T, B, D) -> (T*B, D) so per-step slices of the
    # hoisted gate projection are contiguous rows.
    x_tm = jnp.transpose(x, (1, 0, 2)).astype(jnp.float32).reshape(T * B, D)
    wih_t = jnp.transpose(w_ih).astype(jnp.float32)              # (D, 4H)
    whh_t = jnp.transpose(w_hh).astype(jnp.float32)              # (H, 4H)
    b_all = (b_ih + b_hh).reshape(1, 4 * H).astype(jnp.float32)  # (1, 4H)
    wlin_t = jnp.transpose(w_lin).astype(jnp.float32)            # (H, O)
    blin2 = b_lin.reshape(1, O).astype(jnp.float32)              # (1, O)

    kernel = functools.partial(rnn_encoder_kernel, T=T, B=B, H=H)

    return pl.pallas_call(
        kernel,
        out_shape=jax.ShapeDtypeStruct((B, O), jnp.float32),
        grid=(1,),
        in_specs=[
            pl.BlockSpec((T * B, D), lambda i: (0, 0)),
            pl.BlockSpec((D, 4 * H), lambda i: (0, 0)),
            pl.BlockSpec((H, 4 * H), lambda i: (0, 0)),
            pl.BlockSpec((1, 4 * H), lambda i: (0, 0)),
            pl.BlockSpec((H, O), lambda i: (0, 0)),
            pl.BlockSpec((1, O), lambda i: (0, 0)),
        ],
        out_specs=pl.BlockSpec((B, O), lambda i: (0, 0)),
        compiler_params=pltpu.CompilerParams(
            dimension_semantics=("arbitrary",)),
    )(x_tm, wih_t, whh_t, b_all, wlin_t, blin2)


# --------------------------- Pure-JAX reference ---------------------------- #
def rnn_encoder_reference(x, params):
    w_ih, w_hh, b_ih, b_hh, w_lin, b_lin = (
        params["w_ih"], params["w_hh"], params["b_ih"],
        params["b_hh"], params["w_lin"], params["b_lin"])
    B, T, D = x.shape
    H = w_hh.shape[1]
    h = jnp.zeros((B, H), jnp.float32)
    c = jnp.zeros((B, H), jnp.float32)
    for t in range(T):
        gates = x[:, t, :] @ w_ih.T + h @ w_hh.T + b_ih + b_hh
        i_g = jax.nn.sigmoid(gates[:, 0 * H:1 * H])
        f_g = jax.nn.sigmoid(gates[:, 1 * H:2 * H])
        g_g = jnp.tanh(gates[:, 2 * H:3 * H])
        o_g = jax.nn.sigmoid(gates[:, 3 * H:4 * H])
        c = f_g * c + i_g * g_g
        h = o_g * jnp.tanh(c)
    return h @ w_lin.T + b_lin


# --------------------------------- Main ------------------------------------ #
if __name__ == "__main__":
    # Small shapes consistent with the module: (B, T, in_size)
    B, T, IN_SIZE, HIDDEN, OUT_SIZE = 2, 8, 16, 32, 8

    key = jax.random.PRNGKey(0)
    k = jax.random.split(key, 8)
    scale = 1.0 / np.sqrt(HIDDEN)   # PyTorch LSTM/Linear default uniform init

    params = {
        "w_ih":  jax.random.uniform(k[0], (4 * HIDDEN, IN_SIZE), jnp.float32, -scale, scale),
        "w_hh":  jax.random.uniform(k[1], (4 * HIDDEN, HIDDEN),  jnp.float32, -scale, scale),
        "b_ih":  jax.random.uniform(k[2], (4 * HIDDEN,),         jnp.float32, -scale, scale),
        "b_hh":  jax.random.uniform(k[3], (4 * HIDDEN,),         jnp.float32, -scale, scale),
        "w_lin": jax.random.uniform(k[4], (OUT_SIZE, HIDDEN),    jnp.float32, -scale, scale),
        "b_lin": jax.random.uniform(k[5], (OUT_SIZE,),           jnp.float32, -scale, scale),
    }
    x = jax.random.normal(k[6], (B, T, IN_SIZE), jnp.float32)
    lengths = [T] * B   # accepted and ignored, just like the PyTorch forward

    y = rnn_encoder_forward(x, lengths, params)
    y = jax.block_until_ready(y)

    y_ref = rnn_encoder_reference(x, params)
    np.testing.assert_allclose(np.asarray(y), np.asarray(y_ref), rtol=2e-5, atol=2e-5)

    print("KERNEL_OK")
</pallas_src>

<mosaic_0001>
module attributes {stable_mosaic.version = 11 : i64} {
  func.func @rnn_encoder_kernel(%arg0: i32, %arg1: memref<16x16xf32, #tpu.memory_space<vmem>>, %arg2: memref<16x128xf32, #tpu.memory_space<vmem>>, %arg3: memref<32x128xf32, #tpu.memory_space<vmem>>, %arg4: memref<1x128xf32, #tpu.memory_space<vmem>>, %arg5: memref<32x8xf32, #tpu.memory_space<vmem>>, %arg6: memref<1x8xf32, #tpu.memory_space<vmem>>, %arg7: memref<2x8xf32, #tpu.memory_space<vmem>>) attributes {dimension_semantics = [#tpu.dimension_semantics<arbitrary>], iteration_bounds = array<i64: 1>, scalar_prefetch = 0 : i64, scratch_operands = 0 : i64, tpu.core_type = #tpu.core_type<tc>, window_params = [{pipeline_mode = #tpu.pipeline_mode<synchronous>, transform_indices = @transform_0, window_bounds = array<i64: 16, 16>}, {pipeline_mode = #tpu.pipeline_mode<synchronous>, transform_indices = @transform_1, window_bounds = array<i64: 16, 128>}, {pipeline_mode = #tpu.pipeline_mode<synchronous>, transform_indices = @transform_2, window_bounds = array<i64: 32, 128>}, {pipeline_mode = #tpu.pipeline_mode<synchronous>, transform_indices = @transform_3, window_bounds = array<i64: 1, 128>}, {pipeline_mode = #tpu.pipeline_mode<synchronous>, transform_indices = @transform_4, window_bounds = array<i64: 32, 8>}, {pipeline_mode = #tpu.pipeline_mode<synchronous>, transform_indices = @transform_5, window_bounds = array<i64: 1, 8>}, {pipeline_mode = #tpu.pipeline_mode<synchronous>, transform_indices = @transform_6, window_bounds = array<i64: 2, 8>}]} {
    %c0 = arith.constant 0 : index
    %c0_0 = arith.constant 0 : index
    %0 = vector.load %arg3[%c0, %c0_0] : memref<32x128xf32, #tpu.memory_space<vmem>>, vector<32x128xf32>
    %c0_1 = arith.constant 0 : index
    %c0_2 = arith.constant 0 : index
    %1 = vector.load %arg1[%c0_1, %c0_2] : memref<16x16xf32, #tpu.memory_space<vmem>>, vector<16x16xf32>
    %c0_3 = arith.constant 0 : index
    %c0_4 = arith.constant 0 : index
    %2 = vector.load %arg2[%c0_3, %c0_4] : memref<16x128xf32, #tpu.memory_space<vmem>>, vector<16x128xf32>
    %cst = arith.constant dense<0.000000e+00> : vector<16x128xf32>
    %3 = tpu.matmul %1, %2, %cst {dimension_numbers = #tpu.dot_dimension_numbers<[1], [0], [0], [1], [0, 0, 1, 1], [], []>} : vector<16x16xf32>, vector<16x128xf32>, vector<16x128xf32> -> vector<16x128xf32>
    %c0_5 = arith.constant 0 : index
    %c0_6 = arith.constant 0 : index
    %4 = vector.load %arg4[%c0_5, %c0_6] : memref<1x128xf32, #tpu.memory_space<vmem>>, vector<1x128xf32>
    %5 = vector.broadcast %4 : vector<1x128xf32> to vector<16x128xf32>
    %6 = arith.addf %3, %5 : vector<16x128xf32>
    %7 = tpu.iota {dimensions = array<i32: 1>} : vector<2x128xi32>
    %c64_i32 = arith.constant 64 : i32
    %8 = vector.broadcast %c64_i32 : i32 to vector<2x128xi32>
    %9 = arith.cmpi sge, %7, %8 : vector<2x128xi32>
    %c96_i32 = arith.constant 96 : i32
    %10 = vector.broadcast %c96_i32 : i32 to vector<2x128xi32>
    %11 = arith.cmpi slt, %7, %10 : vector<2x128xi32>
    %12 = arith.andi %9, %11 : vector<2x128xi1>
    %cst_7 = arith.constant 0.000000e+00 : f32
    %13 = vector.broadcast %cst_7 : f32 to vector<2x32xf32>
    %cst_8 = arith.constant 0.000000e+00 : f32
    %14 = vector.broadcast %cst_8 : f32 to vector<2x32xf32>
    %15 = vector.extract_strided_slice %6 {offsets = [0, 0], sizes = [2, 128], strides = [1, 1]} : vector<16x128xf32> to vector<2x128xf32>
    %cst_9 = arith.constant dense<0.000000e+00> : vector<2x128xf32>
    %16 = tpu.matmul %13, %0, %cst_9 {dimension_numbers = #tpu.dot_dimension_numbers<[1], [0], [0], [1], [0, 0, 1, 1], [], []>} : vector<2x32xf32>, vector<32x128xf32>, vector<2x128xf32> -> vector<2x128xf32>
    %17 = arith.addf %15, %16 : vector<2x128xf32>
    %18 = arith.negf %17 : vector<2x128xf32>
    %19 = math.exp %18 : vector<2x128xf32>
    %cst_10 = arith.constant 1.000000e+00 : f32
    %20 = vector.broadcast %cst_10 : f32 to vector<2x128xf32>
    %21 = arith.addf %20, %19 : vector<2x128xf32>
    %22 = arith.divf %20, %21 : vector<2x128xf32>
    %23 = math.tanh %17 : vector<2x128xf32>
    %24 = arith.select %12, %23, %22 : vector<2x128xi1>, vector<2x128xf32>
    %25 = vector.extract_strided_slice %24 {offsets = [0, 0], sizes = [2, 32], strides = [1, 1]} : vector<2x128xf32> to vector<2x32xf32>
    %26 = vector.extract_strided_slice %24 {offsets = [0, 32], sizes = [2, 32], strides = [1, 1]} : vector<2x128xf32> to vector<2x32xf32>
    %27 = vector.extract_strided_slice %24 {offsets = [0, 64], sizes = [2, 32], strides = [1, 1]} : vector<2x128xf32> to vector<2x32xf32>
    %28 = vector.extract_strided_slice %24 {offsets = [0, 96], sizes = [2, 32], strides = [1, 1]} : vector<2x128xf32> to vector<2x32xf32>
    %29 = arith.mulf %26, %14 : vector<2x32xf32>
    %30 = arith.mulf %25, %27 : vector<2x32xf32>
    %31 = arith.addf %29, %30 : vector<2x32xf32>
    %32 = math.tanh %31 : vector<2x32xf32>
    %33 = arith.mulf %28, %32 : vector<2x32xf32>
    %34 = vector.extract_strided_slice %6 {offsets = [2, 0], sizes = [2, 128], strides = [1, 1]} : vector<16x128xf32> to vector<2x128xf32>
    %cst_11 = arith.constant dense<0.000000e+00> : vector<2x128xf32>
    %35 = tpu.matmul %33, %0, %cst_11 {dimension_numbers = #tpu.dot_dimension_numbers<[1], [0], [0], [1], [0, 0, 1, 1], [], []>} : vector<2x32xf32>, vector<32x128xf32>, vector<2x128xf32> -> vector<2x128xf32>
    %36 = arith.addf %34, %35 : vector<2x128xf32>
    %37 = arith.negf %36 : vector<2x128xf32>
    %38 = math.exp %37 : vector<2x128xf32>
    %cst_12 = arith.constant 1.000000e+00 : f32
    %39 = vector.broadcast %cst_12 : f32 to vector<2x128xf32>
    %40 = arith.addf %39, %38 : vector<2x128xf32>
    %41 = arith.divf %39, %40 : vector<2x128xf32>
    %42 = math.tanh %36 : vector<2x128xf32>
    %43 = arith.select %12, %42, %41 : vector<2x128xi1>, vector<2x128xf32>
    %44 = vector.extract_strided_slice %43 {offsets = [0, 0], sizes = [2, 32], strides = [1, 1]} : vector<2x128xf32> to vector<2x32xf32>
    %45 = vector.extract_strided_slice %43 {offsets = [0, 32], sizes = [2, 32], strides = [1, 1]} : vector<2x128xf32> to vector<2x32xf32>
    %46 = vector.extract_strided_slice %43 {offsets = [0, 64], sizes = [2, 32], strides = [1, 1]} : vector<2x128xf32> to vector<2x32xf32>
    %47 = vector.extract_strided_slice %43 {offsets = [0, 96], sizes = [2, 32], strides = [1, 1]} : vector<2x128xf32> to vector<2x32xf32>
    %48 = arith.mulf %45, %31 : vector<2x32xf32>
    %49 = arith.mulf %44, %46 : vector<2x32xf32>
    %50 = arith.addf %48, %49 : vector<2x32xf32>
    %51 = math.tanh %50 : vector<2x32xf32>
    %52 = arith.mulf %47, %51 : vector<2x32xf32>
    %53 = vector.extract_strided_slice %6 {offsets = [4, 0], sizes = [2, 128], strides = [1, 1]} : vector<16x128xf32> to vector<2x128xf32>
    %cst_13 = arith.constant dense<0.000000e+00> : vector<2x128xf32>
    %54 = tpu.matmul %52, %0, %cst_13 {dimension_numbers = #tpu.dot_dimension_numbers<[1], [0], [0], [1], [0, 0, 1, 1], [], []>} : vector<2x32xf32>, vector<32x128xf32>, vector<2x128xf32> -> vector<2x128xf32>
    %55 = arith.addf %53, %54 : vector<2x128xf32>
    %56 = arith.negf %55 : vector<2x128xf32>
    %57 = math.exp %56 : vector<2x128xf32>
    %cst_14 = arith.constant 1.000000e+00 : f32
    %58 = vector.broadcast %cst_14 : f32 to vector<2x128xf32>
    %59 = arith.addf %58, %57 : vector<2x128xf32>
    %60 = arith.divf %58, %59 : vector<2x128xf32>
    %61 = math.tanh %55 : vector<2x128xf32>
    %62 = arith.select %12, %61, %60 : vector<2x128xi1>, vector<2x128xf32>
    %63 = vector.extract_strided_slice %62 {offsets = [0, 0], sizes = [2, 32], strides = [1, 1]} : vector<2x128xf32> to vector<2x32xf32>
    %64 = vector.extract_strided_slice %62 {offsets = [0, 32], sizes = [2, 32], strides = [1, 1]} : vector<2x128xf32> to vector<2x32xf32>
    %65 = vector.extract_strided_slice %62 {offsets = [0, 64], sizes = [2, 32], strides = [1, 1]} : vector<2x128xf32> to vector<2x32xf32>
    %66 = vector.extract_strided_slice %62 {offsets = [0, 96], sizes = [2, 32], strides = [1, 1]} : vector<2x128xf32> to vector<2x32xf32>
    %67 = arith.mulf %64, %50 : vector<2x32xf32>
    %68 = arith.mulf %63, %65 : vector<2x32xf32>
    %69 = arith.addf %67, %68 : vector<2x32xf32>
    %70 = math.tanh %69 : vector<2x32xf32>
    %71 = arith.mulf %66, %70 : vector<2x32xf32>
    %72 = vector.extract_strided_slice %6 {offsets = [6, 0], sizes = [2, 128], strides = [1, 1]} : vector<16x128xf32> to vector<2x128xf32>
    %cst_15 = arith.constant dense<0.000000e+00> : vector<2x128xf32>
    %73 = tpu.matmul %71, %0, %cst_15 {dimension_numbers = #tpu.dot_dimension_numbers<[1], [0], [0], [1], [0, 0, 1, 1], [], []>} : vector<2x32xf32>, vector<32x128xf32>, vector<2x128xf32> -> vector<2x128xf32>
    %74 = arith.addf %72, %73 : vector<2x128xf32>
    %75 = arith.negf %74 : vector<2x128xf32>
    %76 = math.exp %75 : vector<2x128xf32>
    %cst_16 = arith.constant 1.000000e+00 : f32
    %77 = vector.broadcast %cst_16 : f32 to vector<2x128xf32>
    %78 = arith.addf %77, %76 : vector<2x128xf32>
    %79 = arith.divf %77, %78 : vector<2x128xf32>
    %80 = math.tanh %74 : vector<2x128xf32>
    %81 = arith.select %12, %80, %79 : vector<2x128xi1>, vector<2x128xf32>
    %82 = vector.extract_strided_slice %81 {offsets = [0, 0], sizes = [2, 32], strides = [1, 1]} : vector<2x128xf32> to vector<2x32xf32>
    %83 = vector.extract_strided_slice %81 {offsets = [0, 32], sizes = [2, 32], strides = [1, 1]} : vector<2x128xf32> to vector<2x32xf32>
    %84 = vector.extract_strided_slice %81 {offsets = [0, 64], sizes = [2, 32], strides = [1, 1]} : vector<2x128xf32> to vector<2x32xf32>
    %85 = vector.extract_strided_slice %81 {offsets = [0, 96], sizes = [2, 32], strides = [1, 1]} : vector<2x128xf32> to vector<2x32xf32>
    %86 = arith.mulf %83, %69 : vector<2x32xf32>
    %87 = arith.mulf %82, %84 : vector<2x32xf32>
    %88 = arith.addf %86, %87 : vector<2x32xf32>
    %89 = math.tanh %88 : vector<2x32xf32>
    %90 = arith.mulf %85, %89 : vector<2x32xf32>
    %91 = vector.extract_strided_slice %6 {offsets = [8, 0], sizes = [2, 128], strides = [1, 1]} : vector<16x128xf32> to vector<2x128xf32>
    %cst_17 = arith.constant dense<0.000000e+00> : vector<2x128xf32>
    %92 = tpu.matmul %90, %0, %cst_17 {dimension_numbers = #tpu.dot_dimension_numbers<[1], [0], [0], [1], [0, 0, 1, 1], [], []>} : vector<2x32xf32>, vector<32x128xf32>, vector<2x128xf32> -> vector<2x128xf32>
    %93 = arith.addf %91, %92 : vector<2x128xf32>
    %94 = arith.negf %93 : vector<2x128xf32>
    %95 = math.exp %94 : vector<2x128xf32>
    %cst_18 = arith.constant 1.000000e+00 : f32
    %96 = vector.broadcast %cst_18 : f32 to vector<2x128xf32>
    %97 = arith.addf %96, %95 : vector<2x128xf32>
    %98 = arith.divf %96, %97 : vector<2x128xf32>
    %99 = math.tanh %93 : vector<2x128xf32>
    %100 = arith.select %12, %99, %98 : vector<2x128xi1>, vector<2x128xf32>
    %101 = vector.extract_strided_slice %100 {offsets = [0, 0], sizes = [2, 32], strides = [1, 1]} : vector<2x128xf32> to vector<2x32xf32>
    %102 = vector.extract_strided_slice %100 {offsets = [0, 32], sizes = [2, 32], strides = [1, 1]} : vector<2x128xf32> to vector<2x32xf32>
    %103 = vector.extract_strided_slice %100 {offsets = [0, 64], sizes = [2, 32], strides = [1, 1]} : vector<2x128xf32> to vector<2x32xf32>
    %104 = vector.extract_strided_slice %100 {offsets = [0, 96], sizes = [2, 32], strides = [1, 1]} : vector<2x128xf32> to vector<2x32xf32>
    %105 = arith.mulf %102, %88 : vector<2x32xf32>
    %106 = arith.mulf %101, %103 : vector<2x32xf32>
    %107 = arith.addf %105, %106 : vector<2x32xf32>
    %108 = math.tanh %107 : vector<2x32xf32>
    %109 = arith.mulf %104, %108 : vector<2x32xf32>
    %110 = vector.extract_strided_slice %6 {offsets = [10, 0], sizes = [2, 128], strides = [1, 1]} : vector<16x128xf32> to vector<2x128xf32>
    %cst_19 = arith.constant dense<0.000000e+00> : vector<2x128xf32>
    %111 = tpu.matmul %109, %0, %cst_19 {dimension_numbers = #tpu.dot_dimension_numbers<[1], [0], [0], [1], [0, 0, 1, 1], [], []>} : vector<2x32xf32>, vector<32x128xf32>, vector<2x128xf32> -> vector<2x128xf32>
    %112 = arith.addf %110, %111 : vector<2x128xf32>
    %113 = arith.negf %112 : vector<2x128xf32>
    %114 = math.exp %113 : vector<2x128xf32>
    %cst_20 = arith.constant 1.000000e+00 : f32
    %115 = vector.broadcast %cst_20 : f32 to vector<2x128xf32>
    %116 = arith.addf %115, %114 : vector<2x128xf32>
    %117 = arith.divf %115, %116 : vector<2x128xf32>
    %118 = math.tanh %112 : vector<2x128xf32>
    %119 = arith.select %12, %118, %117 : vector<2x128xi1>, vector<2x128xf32>
    %120 = vector.extract_strided_slice %119 {offsets = [0, 0], sizes = [2, 32], strides = [1, 1]} : vector<2x128xf32> to vector<2x32xf32>
    %121 = vector.extract_strided_slice %119 {offsets = [0, 32], sizes = [2, 32], strides = [1, 1]} : vector<2x128xf32> to vector<2x32xf32>
    %122 = vector.extract_strided_slice %119 {offsets = [0, 64], sizes = [2, 32], strides = [1, 1]} : vector<2x128xf32> to vector<2x32xf32>
    %123 = vector.extract_strided_slice %119 {offsets = [0, 96], sizes = [2, 32], strides = [1, 1]} : vector<2x128xf32> to vector<2x32xf32>
    %124 = arith.mulf %121, %107 : vector<2x32xf32>
    %125 = arith.mulf %120, %122 : vector<2x32xf32>
    %126 = arith.addf %124, %125 : vector<2x32xf32>
    %127 = math.tanh %126 : vector<2x32xf32>
    %128 = arith.mulf %123, %127 : vector<2x32xf32>
    %129 = vector.extract_strided_slice %6 {offsets = [12, 0], sizes = [2, 128], strides = [1, 1]} : vector<16x128xf32> to vector<2x128xf32>
    %cst_21 = arith.constant dense<0.000000e+00> : vector<2x128xf32>
    %130 = tpu.matmul %128, %0, %cst_21 {dimension_numbers = #tpu.dot_dimension_numbers<[1], [0], [0], [1], [0, 0, 1, 1], [], []>} : vector<2x32xf32>, vector<32x128xf32>, vector<2x128xf32> -> vector<2x128xf32>
    %131 = arith.addf %129, %130 : vector<2x128xf32>
    %132 = arith.negf %131 : vector<2x128xf32>
    %133 = math.exp %132 : vector<2x128xf32>
    %cst_22 = arith.constant 1.000000e+00 : f32
    %134 = vector.broadcast %cst_22 : f32 to vector<2x128xf32>
    %135 = arith.addf %134, %133 : vector<2x128xf32>
    %136 = arith.divf %134, %135 : vector<2x128xf32>
    %137 = math.tanh %131 : vector<2x128xf32>
    %138 = arith.select %12, %137, %136 : vector<2x128xi1>, vector<2x128xf32>
    %139 = vector.extract_strided_slice %138 {offsets = [0, 0], sizes = [2, 32], strides = [1, 1]} : vector<2x128xf32> to vector<2x32xf32>
    %140 = vector.extract_strided_slice %138 {offsets = [0, 32], sizes = [2, 32], strides = [1, 1]} : vector<2x128xf32> to vector<2x32xf32>
    %141 = vector.extract_strided_slice %138 {offsets = [0, 64], sizes = [2, 32], strides = [1, 1]} : vector<2x128xf32> to vector<2x32xf32>
    %142 = vector.extract_strided_slice %138 {offsets = [0, 96], sizes = [2, 32], strides = [1, 1]} : vector<2x128xf32> to vector<2x32xf32>
    %143 = arith.mulf %140, %126 : vector<2x32xf32>
    %144 = arith.mulf %139, %141 : vector<2x32xf32>
    %145 = arith.addf %143, %144 : vector<2x32xf32>
    %146 = math.tanh %145 : vector<2x32xf32>
    %147 = arith.mulf %142, %146 : vector<2x32xf32>
    %148 = vector.extract_strided_slice %6 {offsets = [14, 0], sizes = [2, 128], strides = [1, 1]} : vector<16x128xf32> to vector<2x128xf32>
    %cst_23 = arith.constant dense<0.000000e+00> : vector<2x128xf32>
    %149 = tpu.matmul %147, %0, %cst_23 {dimension_numbers = #tpu.dot_dimension_numbers<[1], [0], [0], [1], [0, 0, 1, 1], [], []>} : vector<2x32xf32>, vector<32x128xf32>, vector<2x128xf32> -> vector<2x128xf32>
    %150 = arith.addf %148, %149 : vector<2x128xf32>
    %151 = arith.negf %150 : vector<2x128xf32>
    %152 = math.exp %151 : vector<2x128xf32>
    %cst_24 = arith.constant 1.000000e+00 : f32
    %153 = vector.broadcast %cst_24 : f32 to vector<2x128xf32>
    %154 = arith.addf %153, %152 : vector<2x128xf32>
    %155 = arith.divf %153, %154 : vector<2x128xf32>
    %156 = math.tanh %150 : vector<2x128xf32>
    %157 = arith.select %12, %156, %155 : vector<2x128xi1>, vector<2x128xf32>
    %158 = vector.extract_strided_slice %157 {offsets = [0, 0], sizes = [2, 32], strides = [1, 1]} : vector<2x128xf32> to vector<2x32xf32>
    %159 = vector.extract_strided_slice %157 {offsets = [0, 32], sizes = [2, 32], strides = [1, 1]} : vector<2x128xf32> to vector<2x32xf32>
    %160 = vector.extract_strided_slice %157 {offsets = [0, 64], sizes = [2, 32], strides = [1, 1]} : vector<2x128xf32> to vector<2x32xf32>
    %161 = vector.extract_strided_slice %157 {offsets = [0, 96], sizes = [2, 32], strides = [1, 1]} : vector<2x128xf32> to vector<2x32xf32>
    %162 = arith.mulf %159, %145 : vector<2x32xf32>
    %163 = arith.mulf %158, %160 : vector<2x32xf32>
    %164 = arith.addf %162, %163 : vector<2x32xf32>
    %165 = math.tanh %164 : vector<2x32xf32>
    %166 = arith.mulf %161, %165 : vector<2x32xf32>
    %c0_25 = arith.constant 0 : index
    %c0_26 = arith.constant 0 : index
    %167 = vector.load %arg5[%c0_25, %c0_26] : memref<32x8xf32, #tpu.memory_space<vmem>>, vector<32x8xf32>
    %cst_27 = arith.constant dense<0.000000e+00> : vector<2x8xf32>
    %168 = tpu.matmul %166, %167, %cst_27 {dimension_numbers = #tpu.dot_dimension_numbers<[1], [0], [0], [1], [0, 0, 1, 1], [], []>} : vector<2x32xf32>, vector<32x8xf32>, vector<2x8xf32> -> vector<2x8xf32>
    %c0_28 = arith.constant 0 : index
    %c0_29 = arith.constant 0 : index
    %169 = vector.load %arg6[%c0_28, %c0_29] : memref<1x8xf32, #tpu.memory_space<vmem>>, vector<1x8xf32>
    %170 = vector.broadcast %169 : vector<1x8xf32> to vector<2x8xf32>
    %171 = arith.addf %168, %170 : vector<2x8xf32>
    %c0_30 = arith.constant 0 : index
    %c0_31 = arith.constant 0 : index
    %172 = vector.load %arg7[%c0_30, %c0_31] : memref<2x8xf32, #tpu.memory_space<vmem>>, vector<2x8xf32>
    tpu.vector_store %arg7[%c0_30, %c0_31], %171 {strides = array<i32>} : memref<2x8xf32, #tpu.memory_space<vmem>>, vector<2x8xf32>,
    return
  }
  func.func @transform_0(%arg0: i32) -> (i32, i32) {
    %c0_i32 = arith.constant 0 : i32
    %c0_i32_0 = arith.constant 0 : i32
    %c0_i32_1 = arith.constant 0 : i32
    return %c0_i32, %c0_i32_0 : i32, i32
  }
  func.func @transform_1(%arg0: i32) -> (i32, i32) {
    %c0_i32 = arith.constant 0 : i32
    %c0_i32_0 = arith.constant 0 : i32
    %c0_i32_1 = arith.constant 0 : i32
    return %c0_i32, %c0_i32_0 : i32, i32
  }
  func.func @transform_2(%arg0: i32) -> (i32, i32) {
    %c0_i32 = arith.constant 0 : i32
    %c0_i32_0 = arith.constant 0 : i32
    %c0_i32_1 = arith.constant 0 : i32
    return %c0_i32, %c0_i32_0 : i32, i32
  }
  func.func @transform_3(%arg0: i32) -> (i32, i32) {
    %c0_i32 = arith.constant 0 : i32
    %c0_i32_0 = arith.constant 0 : i32
    %c0_i32_1 = arith.constant 0 : i32
    return %c0_i32, %c0_i32_0 : i32, i32
  }
  func.func @transform_4(%arg0: i32) -> (i32, i32) {
    %c0_i32 = arith.constant 0 : i32
    %c0_i32_0 = arith.constant 0 : i32
    %c0_i32_1 = arith.constant 0 : i32
    return %c0_i32, %c0_i32_0 : i32, i32
  }
  func.func @transform_5(%arg0: i32) -> (i32, i32) {
    %c0_i32 = arith.constant 0 : i32
    %c0_i32_0 = arith.constant 0 : i32
    %c0_i32_1 = arith.constant 0 : i32
    return %c0_i32, %c0_i32_0 : i32, i32
  }
  func.func @transform_6(%arg0: i32) -> (i32, i32) {
    %c0_i32 = arith.constant 0 : i32
    %c0_i32_0 = arith.constant 0 : i32
    %c0_i32_1 = arith.constant 0 : i32
    return %c0_i32, %c0_i32_0 : i32, i32
  }
}

</mosaic_0001>

<llo_original>
// kernel: tpu_custom_call.1
$region0: #{tpu_custom_call.1}
  #allocation0 [shape = 'u32[]', space=smem, size = 0x4, offset = 0x4, fixed_abs, tag = 'smem constant byte address 0x4 - core index']
  #allocation1 [shape = 'u32[72,128]{1,0:T(1,128)}', space=vmem, size = 0x9000, scoped, tag = 'internal scratch']
  %s0 = inlined_call_operand.hbm [shape: f32[16,16], index: 0, kind: input, shape index: {}]
  %s1 = inlined_call_operand.hbm [shape: f32[16,128], index: 1, kind: input, shape index: {}]
  %s2 = inlined_call_operand.vmem [shape: f32[32,128], index: 2, kind: input, shape index: {}]
  %s3 = inlined_call_operand.vmem [shape: f32[1,128], index: 3, kind: input, shape index: {}]
  %s4 = inlined_call_operand.vmem [shape: f32[32,8], index: 4, kind: input, shape index: {}]
  %s5 = inlined_call_operand.vmem [shape: f32[1,8], index: 5, kind: input, shape index: {}]
  %s6 = inlined_call_operand.hbm [shape: f32[2,8], index: 6, kind: output, shape index: {}]
  %s7 = sld [smem:[#allocation0]]
  $region42: #{tpu_custom_call.1} parent=0
    _
  %s9 = ssub.s32 1, %s7
  %s10 = scalar_select 0, %s9, %s7
  $region1: #{tpu_custom_call.1} parent=0
    #allocation2 [shape = 'u8[8192]{0}', space=vmem, size = 0x2000, scoped, tag = 'input window, operand 0, single buffered']
    #allocation3 [shape = 's32[1]{0}', space=sflag, size = 0x4, scoped, tag = 'scoped memory for tpu_custom_call.1']
    #allocation4 [shape = 's32[1]{0}', space=sflag, size = 0x4, scoped, tag = 'scoped memory for tpu_custom_call.1']
    #allocation5 [shape = 'u8[8192]{0}', space=vmem, size = 0x2000, scoped, tag = 'input window, operand 1, single buffered']
    #allocation6 [shape = 's32[1]{0}', space=sflag, size = 0x4, scoped, tag = 'scoped memory for tpu_custom_call.1']
    #allocation7 [shape = 'u8[1024]{0}', space=vmem, size = 0x400, scoped, tag = 'output window, operand 0, single buffered']
    %11 = vsyncpa [#allocation3], 0
    %12 = vsyncpa [#allocation6], 0
    %13 = vsyncpa [#allocation4], 0
    // Predicated region
    $region2: #{tpu_custom_call.1} parent=1 // pred_check
      _
    $region3: #{tpu_custom_call.1} parent=1 // pred_check_branch
      %15 = sbr.rel (0) target = $region5
    $region4: #{tpu_custom_call.1} parent=1 // pred_region
      %17 = vsyncadd [#allocation3], 0
      %s18 = sshll.u32 %s0, 4
      %s19 = int_to_ptr.hbm [resolvable:$true] %s18
      %s20 = sshll.u32 [#allocation2], 4
      %s21 = int_to_ptr.vmem [resolvable:$true] %s20
      %26 = dma.hbm_to_vmem [thread:$0]  %s19, 256, %s21, [#allocation3], 128, 128, 8
    $region5: #{tpu_custom_call.1} parent=1 // pred_fallthru
      _
    // Predicated region
    $region6: #{tpu_custom_call.1} parent=1 // pred_check
      _
    $region7: #{tpu_custom_call.1} parent=1 // pred_check_branch
      %28 = sbr.rel (0) target = $region9
    $region8: #{tpu_custom_call.1} parent=1 // pred_region
      %30 = vsyncadd [#allocation6], 0
      %s31 = sshll.u32 %s1, 4
      %s32 = int_to_ptr.hbm [resolvable:$true] %s31
      %s33 = sshll.u32 [#allocation5], 4
      %s34 = int_to_ptr.vmem [resolvable:$true] %s33
      %39 = dma.hbm_to_vmem [thread:$0]  %s32, 256, %s34, [#allocation6], 128, 128, 8
    $region9: #{tpu_custom_call.1} parent=1 // pred_fallthru
      _
    // Predicated region
    $region10: #{tpu_custom_call.1} parent=1 // pred_check
      _
    $region11: #{tpu_custom_call.1} parent=1 // pred_check_branch
      %41 = sbr.rel (0) target = $region13
    $region12: #{tpu_custom_call.1} parent=1 // pred_region
      _
    $region13: #{tpu_custom_call.1} parent=1 // pred_fallthru
      _
    // Predicated region
    $region14: #{tpu_custom_call.1} parent=1 // pred_check
      _
    $region15: #{tpu_custom_call.1} parent=1 // pred_check_branch
      %43 = sbr.rel (0) target = $region17
    $region16: #{tpu_custom_call.1} parent=1 // pred_region
      _
    $region17: #{tpu_custom_call.1} parent=1 // pred_fallthru
      _
    // Predicated region
    $region18: #{tpu_custom_call.1} parent=1 // pred_check
      _
    $region19: #{tpu_custom_call.1} parent=1 // pred_check_branch
      %45 = sbr.rel (0) target = $region21
    $region20: #{tpu_custom_call.1} parent=1 // pred_region
      _
    $region21: #{tpu_custom_call.1} parent=1 // pred_fallthru
      _
    // Predicated region
    $region22: #{tpu_custom_call.1} parent=1 // pred_check
      _
    $region23: #{tpu_custom_call.1} parent=1 // pred_check_branch
      %47 = sbr.rel (0) target = $region25
    $region24: #{tpu_custom_call.1} parent=1 // pred_region
      _
    $region25: #{tpu_custom_call.1} parent=1 // pred_fallthru
      _
    // Predicated region
    $region26: #{tpu_custom_call.1} parent=1 // pred_check
      _
    $region27: #{tpu_custom_call.1} parent=1 // pred_check_branch
      %49 = sbr.rel (0) target = $region29
    $region28: #{tpu_custom_call.1} parent=1 // pred_region
      %51 = dma.done [#allocation3], 256
    $region29: #{tpu_custom_call.1} parent=1 // pred_fallthru
      _
    // Predicated region
    $region30: #{tpu_custom_call.1} parent=1 // pred_check
      _
    $region31: #{tpu_custom_call.1} parent=1 // pred_check_branch
      %53 = sbr.rel (0) target = $region33
    $region32: #{tpu_custom_call.1} parent=1 // pred_region
      %55 = dma.done [#allocation6], 256
    $region33: #{tpu_custom_call.1} parent=1 // pred_fallthru
      _
    %v56 = vld [vmem:[%s2] sm:$0xff]
    %v57 = vld [vmem:[%s2 + $0x8] sm:$0xff]
    %v58 = vld [vmem:[%s2 + $0x10] sm:$0xff]
    %v59 = vld [vmem:[%s2 + $0x18] sm:$0xff]
    %v60 = vld [vmem:[#allocation2] sm:$0xff]
    %v61 = vld [vmem:[#allocation2 + $0x8] sm:$0xff]
    %v62 = vld [vmem:[#allocation5] sm:$0xff]
    %v63 = vld [vmem:[#allocation5 + $0x8] sm:$0xff]
    %v64 = vld [vmem:[%s3] sm:$0x1]
    %v66 = vperm.slane %v64, 0
    %vm68 = vcmask 130048
    %v70 = vsel %vm68, %v60, 0
    %v73 = vsel %vm68, %v61, 0
    %75 = vmatpush.msra.mxu0 0.0
    %76 = vmatpush.msra.mxu0 0.0
    %77 = vmatpush.msra.mxu0 0.0
    %78 = vmatpush.msra.mxu0 0.0
    %79 = vmatpush.msra.mxu0 0.0
    %80 = vmatpush.msra.mxu0 0.0
    %81 = vmatpush.msra.mxu0 0.0
    %82 = vmatpush.msra.mxu0 0.0
    %83 = vmatpush.msra.mxu0 0.0
    %84 = vmatpush.msra.mxu0 0.0
    %85 = vmatpush.msra.mxu0 0.0
    %86 = vmatpush.msra.mxu0 0.0
    %87 = vmatpush.msra.mxu0 0.0
    %88 = vmatpush.msra.mxu0 0.0
    %89 = vmatpush.msra.mxu0 %v63
    %90 = vmatpush.msra.mxu0 %v62
    %91 = vmatmul.f32.gmra.mxu0 %v70
    %v92 = vpop.f32.mrf.mxu0
    %v93 = vadd.f32 %v66, %v92
    %94 = vmatmul.f32.gmra.mxu0 %v73
    %v95 = vpop.f32.mrf.mxu0
    %v96 = vadd.f32 %v66, %v95
    %97 = vdwg.mxu0
    %v98 = vlaneseq
    %v99 = vand.u32 %v98, 127
    %vm100 = vcmp.ge.s32.totalorder %v99, 64
    %vm101 = vcmp.lt.s32.totalorder %v99, 96
    %vm102 = vmand %vm100, %vm101
    %vm103 = vcmask 261120
    %v105 = vsel %vm103, 0.0, 0
    %107 = vmatpush.msra.mxu0 0.0
    %108 = vmatpush.msra.mxu0 0.0
    %109 = vmatpush.msra.mxu0 0.0
    %110 = vmatpush.msra.mxu0 0.0
    %111 = vmatpush.msra.mxu0 0.0
    %112 = vmatpush.msra.mxu0 0.0
    %113 = vmatpush.msra.mxu0 0.0
    %114 = vmatpush.msra.mxu0 0.0
    %115 = vmatpush.msra.mxu0 0.0
    %116 = vmatpush.msra.mxu0 0.0
    %117 = vmatpush.msra.mxu0 0.0
    %118 = vmatpush.msra.mxu0 0.0
    %119 = vmatpush.msra.mxu0 %v59
    %120 = vmatpush.msra.mxu0 %v58
    %121 = vmatpush.msra.mxu0 %v57
    %122 = vmatpush.msra.mxu0 %v56
    %123 = vmatmul.f32.gmra.mxu0 %v105
    %v124 = vpop.f32.mrf.mxu0
    %v125 = vadd.f32 0.0, %v124
    %126 = vdwg.mxu0
    %v127 = vadd.f32 %v93, %v125
    %v128 = vxor.u32 %v127, 2147483648
    %v129 = vmul.f32 %v128, 1.442695
    %v130 = vpow.pop %v129
    %v131 = vadd.f32 %v130, 1.0
    %v132 = vrcp.pop %v131
    %v133 = vmul.f32 %v131, %v132
    %v134 = vsub.f32 1.0, %v133
    %v135 = vmul.f32 %v132, %v134
    %v136 = vadd.f32 %v132, %v135
    %vm137 = vweird.f32 %v131
    %vm138 = vweird.f32 %v132
    %vm139 = vmor %vm137, %vm138
    %v140 = vsel %vm139, %v132, %v136
    %v141 = vand.u32 2147483647, %v131
    %vm142 = vcmp.eq.f32.partialorder %v141, 8.507059e+37
    %v143 = vand.u32 %v131, 2147483648
    %v144 = vor.u32 1.1754944e-38, %v143
    %v145 = vsel %vm142, %v144, %v140
    %v146 = vmul.f32 1.0, %v145
    %v147 = vtanh.pop %v127
    %v148 = vsel %vm102, %v147, %v146
    %v149 = vmul.f32 %v148, 0.0
    %151 = vrot.lane.b32.xlu0 %v148, 64
    %v152 = vpop.permute.xlu0 %151
    %v154 = vmul.f32 %v148, %v152
    %156 = vrot.lane.b32.xlu0 %v154, 32
    %v157 = vpop.permute.xlu0 %156
    %v159 = vadd.f32 %v149, %v157
    %v160 = vtanh.pop %v159
    %162 = vrot.lane.b32.xlu0 %v160, 64
    %v163 = vpop.permute.xlu0 %162
    %v165 = vmul.f32 %v148, %v163
    %167 = vrot.lane.b32.xlu0 %v165, 32
    %v168 = vpop.permute.xlu0 %167
    %v169 = vsel %vm103, %v168, 0
    %171 = vmatpush.msra.mxu0 0.0
    %172 = vmatpush.msra.mxu0 0.0
    %173 = vmatpush.msra.mxu0 0.0
    %174 = vmatpush.msra.mxu0 0.0
    %175 = vmatpush.msra.mxu0 0.0
    %176 = vmatpush.msra.mxu0 0.0
    %177 = vmatpush.msra.mxu0 0.0
    %178 = vmatpush.msra.mxu0 0.0
    %179 = vmatpush.msra.mxu0 0.0
    %180 = vmatpush.msra.mxu0 0.0
    %181 = vmatpush.msra.mxu0 0.0
    %182 = vmatpush.msra.mxu0 0.0
    %183 = vmatpush.msra.mxu0 %v59
    %184 = vmatpush.msra.mxu0 %v58
    %185 = vmatpush.msra.mxu0 %v57
    %186 = vmatpush.msra.mxu0 %v56
    %187 = vmatmul.f32.gmra.mxu0 %v169
    %v188 = vpop.f32.mrf.mxu0
    %v189 = vadd.f32 0.0, %v188
    %190 = vdwg.mxu0
    %v192 = vrot.slane %v189, 6
    %v194 = vadd.f32 %v93, %v192
    %v195 = vxor.u32 %v194, 2147483648
    %v196 = vmul.f32 %v195, 1.442695
    %v197 = vpow.pop %v196
    %v198 = vadd.f32 %v197, 1.0
    %v199 = vrcp.pop %v198
    %v200 = vmul.f32 %v198, %v199
    %v201 = vsub.f32 1.0, %v200
    %v202 = vmul.f32 %v199, %v201
    %v203 = vadd.f32 %v199, %v202
    %vm204 = vweird.f32 %v198
    %vm205 = vweird.f32 %v199
    %vm206 = vmor %vm204, %vm205
    %v207 = vsel %vm206, %v199, %v203
    %v208 = vand.u32 2147483647, %v198
    %vm209 = vcmp.eq.f32.partialorder %v208, 8.507059e+37
    %v210 = vand.u32 %v198, 2147483648
    %v211 = vor.u32 1.1754944e-38, %v210
    %v212 = vsel %vm209, %v211, %v207
    %v213 = vmul.f32 1.0, %v212
    %v214 = vtanh.pop %v194
    %v215 = vsel %vm102, %v214, %v213
    %v217 = vrot.slane %v159, 6
    %v219 = vmul.f32 %v215, %v217
    %221 = vrot.lane.b32.xlu0 %v215, 64
    %v222 = vpop.permute.xlu0 %221
    %v224 = vmul.f32 %v215, %v222
    %226 = vrot.lane.b32.xlu0 %v224, 32
    %v227 = vpop.permute.xlu0 %226
    %v229 = vadd.f32 %v219, %v227
    %v230 = vtanh.pop %v229
    %232 = vrot.lane.b32.xlu0 %v230, 64
    %v233 = vpop.permute.xlu0 %232
    %v235 = vmul.f32 %v215, %v233
    %v237 = vrot.slane %v235, 2
    %238 = vrot.lane.b32.xlu0 %v237, 32
    %v239 = vpop.permute.xlu0 %238
    %v240 = vsel %vm103, %v239, 0
    %242 = vmatpush.msra.mxu0 0.0
    %243 = vmatpush.msra.mxu0 0.0
    %244 = vmatpush.msra.mxu0 0.0
    %245 = vmatpush.msra.mxu0 0.0
    %246 = vmatpush.msra.mxu0 0.0
    %247 = vmatpush.msra.mxu0 0.0
    %248 = vmatpush.msra.mxu0 0.0
    %249 = vmatpush.msra.mxu0 0.0
    %250 = vmatpush.msra.mxu0 0.0
    %251 = vmatpush.msra.mxu0 0.0
    %252 = vmatpush.msra.mxu0 0.0
    %253 = vmatpush.msra.mxu0 0.0
    %254 = vmatpush.msra.mxu0 %v59
    %255 = vmatpush.msra.mxu0 %v58
    %256 = vmatpush.msra.mxu0 %v57
    %257 = vmatpush.msra.mxu0 %v56
    %258 = vmatmul.f32.gmra.mxu0 %v240
    %v259 = vpop.f32.mrf.mxu0
    %v260 = vadd.f32 0.0, %v259
    %261 = vdwg.mxu0
    %v263 = vrot.slane %v260, 4
    %v265 = vadd.f32 %v93, %v263
    %v266 = vxor.u32 %v265, 2147483648
    %v267 = vmul.f32 %v266, 1.442695
    %v268 = vpow.pop %v267
    %v269 = vadd.f32 %v268, 1.0
    %v270 = vrcp.pop %v269
    %v271 = vmul.f32 %v269, %v270
    %v272 = vsub.f32 1.0, %v271
    %v273 = vmul.f32 %v270, %v272
    %v274 = vadd.f32 %v270, %v273
    %vm275 = vweird.f32 %v269
    %vm276 = vweird.f32 %v270
    %vm277 = vmor %vm275, %vm276
    %v278 = vsel %vm277, %v270, %v274
    %v279 = vand.u32 2147483647, %v269
    %vm280 = vcmp.eq.f32.partialorder %v279, 8.507059e+37
    %v281 = vand.u32 %v269, 2147483648
    %v282 = vor.u32 1.1754944e-38, %v281
    %v283 = vsel %vm280, %v282, %v278
    %v284 = vmul.f32 1.0, %v283
    %v285 = vtanh.pop %v265
    %v286 = vsel %vm102, %v285, %v284
    %v288 = vrot.slane %v229, 6
    %v290 = vmul.f32 %v286, %v288
    %292 = vrot.lane.b32.xlu0 %v286, 64
    %v293 = vpop.permute.xlu0 %292
    %v295 = vmul.f32 %v286, %v293
    %297 = vrot.lane.b32.xlu0 %v295, 32
    %v298 = vpop.permute.xlu0 %297
    %v300 = vadd.f32 %v290, %v298
    %v301 = vtanh.pop %v300
    %303 = vrot.lane.b32.xlu0 %v301, 64
    %v304 = vpop.permute.xlu0 %303
    %v306 = vmul.f32 %v286, %v304
    %v308 = vrot.slane %v306, 4
    %309 = vrot.lane.b32.xlu0 %v308, 32
    %v310 = vpop.permute.xlu0 %309
    %v311 = vsel %vm103, %v310, 0
    %313 = vmatpush.msra.mxu0 0.0
    %314 = vmatpush.msra.mxu0 0.0
    %315 = vmatpush.msra.mxu0 0.0
    %316 = vmatpush.msra.mxu0 0.0
    %317 = vmatpush.msra.mxu0 0.0
    %318 = vmatpush.msra.mxu0 0.0
    %319 = vmatpush.msra.mxu0 0.0
    %320 = vmatpush.msra.mxu0 0.0
    %321 = vmatpush.msra.mxu0 0.0
    %322 = vmatpush.msra.mxu0 0.0
    %323 = vmatpush.msra.mxu0 0.0
    %324 = vmatpush.msra.mxu0 0.0
    %325 = vmatpush.msra.mxu0 %v59
    %326 = vmatpush.msra.mxu0 %v58
    %327 = vmatpush.msra.mxu0 %v57
    %328 = vmatpush.msra.mxu0 %v56
    %329 = vmatmul.f32.gmra.mxu0 %v311
    %v330 = vpop.f32.mrf.mxu0
    %v331 = vadd.f32 0.0, %v330
    %332 = vdwg.mxu0
    %v334 = vrot.slane %v331, 2
    %v336 = vadd.f32 %v93, %v334
    %v337 = vxor.u32 %v336, 2147483648
    %v338 = vmul.f32 %v337, 1.442695
    %v339 = vpow.pop %v338
    %v340 = vadd.f32 %v339, 1.0
    %v341 = vrcp.pop %v340
    %v342 = vmul.f32 %v340, %v341
    %v343 = vsub.f32 1.0, %v342
    %v344 = vmul.f32 %v341, %v343
    %v345 = vadd.f32 %v341, %v344
    %vm346 = vweird.f32 %v340
    %vm347 = vweird.f32 %v341
    %vm348 = vmor %vm346, %vm347
    %v349 = vsel %vm348, %v341, %v345
    %v350 = vand.u32 2147483647, %v340
    %vm351 = vcmp.eq.f32.partialorder %v350, 8.507059e+37
    %v352 = vand.u32 %v340, 2147483648
    %v353 = vor.u32 1.1754944e-38, %v352
    %v354 = vsel %vm351, %v353, %v349
    %v355 = vmul.f32 1.0, %v354
    %v356 = vtanh.pop %v336
    %v357 = vsel %vm102, %v356, %v355
    %v359 = vrot.slane %v300, 6
    %v361 = vmul.f32 %v357, %v359
    %363 = vrot.lane.b32.xlu0 %v357, 64
    %v364 = vpop.permute.xlu0 %363
    %v366 = vmul.f32 %v357, %v364
    %368 = vrot.lane.b32.xlu0 %v366, 32
    %v369 = vpop.permute.xlu0 %368
    %v371 = vadd.f32 %v361, %v369
    %v372 = vtanh.pop %v371
    %374 = vrot.lane.b32.xlu0 %v372, 64
    %v375 = vpop.permute.xlu0 %374
    %v377 = vmul.f32 %v357, %v375
    %v379 = vrot.slane %v377, 6
    %380 = vrot.lane.b32.xlu0 %v379, 32
    %v381 = vpop.permute.xlu0 %380
    %v382 = vsel %vm103, %v381, 0
    %384 = vmatpush.msra.mxu0 0.0
    %385 = vmatpush.msra.mxu0 0.0
    %386 = vmatpush.msra.mxu0 0.0
    %387 = vmatpush.msra.mxu0 0.0
    %388 = vmatpush.msra.mxu0 0.0
    %389 = vmatpush.msra.mxu0 0.0
    %390 = vmatpush.msra.mxu0 0.0
    %391 = vmatpush.msra.mxu0 0.0
    %392 = vmatpush.msra.mxu0 0.0
    %393 = vmatpush.msra.mxu0 0.0
    %394 = vmatpush.msra.mxu0 0.0
    %395 = vmatpush.msra.mxu0 0.0
    %396 = vmatpush.msra.mxu0 %v59
    %397 = vmatpush.msra.mxu0 %v58
    %398 = vmatpush.msra.mxu0 %v57
    %399 = vmatpush.msra.mxu0 %v56
    %400 = vmatmul.f32.gmra.mxu0 %v382
    %v401 = vpop.f32.mrf.mxu0
    %v402 = vadd.f32 0.0, %v401
    %403 = vdwg.mxu0
    %v404 = vadd.f32 %v96, %v402
    %v405 = vxor.u32 %v404, 2147483648
    %v406 = vmul.f32 %v405, 1.442695
    %v407 = vpow.pop %v406
    %v408 = vadd.f32 %v407, 1.0
    %v409 = vrcp.pop %v408
    %v410 = vmul.f32 %v408, %v409
    %v411 = vsub.f32 1.0, %v410
    %v412 = vmul.f32 %v409, %v411
    %v413 = vadd.f32 %v409, %v412
    %vm414 = vweird.f32 %v408
    %vm415 = vweird.f32 %v409
    %vm416 = vmor %vm414, %vm415
    %v417 = vsel %vm416, %v409, %v413
    %v418 = vand.u32 2147483647, %v408
    %vm419 = vcmp.eq.f32.partialorder %v418, 8.507059e+37
    %v420 = vand.u32 %v408, 2147483648
    %v421 = vor.u32 1.1754944e-38, %v420
    %v422 = vsel %vm419, %v421, %v417
    %v423 = vmul.f32 1.0, %v422
    %v424 = vtanh.pop %v404
    %v425 = vsel %vm102, %v424, %v423
    %v427 = vrot.slane %v371, 6
    %v429 = vmul.f32 %v425, %v427
    %431 = vrot.lane.b32.xlu0 %v425, 64
    %v432 = vpop.permute.xlu0 %431
    %v434 = vmul.f32 %v425, %v432
    %436 = vrot.lane.b32.xlu0 %v434, 32
    %v437 = vpop.permute.xlu0 %436
    %v439 = vadd.f32 %v429, %v437
    %v440 = vtanh.pop %v439
    %442 = vrot.lane.b32.xlu0 %v440, 64
    %v443 = vpop.permute.xlu0 %442
    %v445 = vmul.f32 %v425, %v443
    %447 = vrot.lane.b32.xlu0 %v445, 32
    %v448 = vpop.permute.xlu0 %447
    %v449 = vsel %vm103, %v448, 0
    %451 = vmatpush.msra.mxu0 0.0
    %452 = vmatpush.msra.mxu0 0.0
    %453 = vmatpush.msra.mxu0 0.0
    %454 = vmatpush.msra.mxu0 0.0
    %455 = vmatpush.msra.mxu0 0.0
    %456 = vmatpush.msra.mxu0 0.0
    %457 = vmatpush.msra.mxu0 0.0
    %458 = vmatpush.msra.mxu0 0.0
    %459 = vmatpush.msra.mxu0 0.0
    %460 = vmatpush.msra.mxu0 0.0
    %461 = vmatpush.msra.mxu0 0.0
    %462 = vmatpush.msra.mxu0 0.0
    %463 = vmatpush.msra.mxu0 %v59
    %464 = vmatpush.msra.mxu0 %v58
    %465 = vmatpush.msra.mxu0 %v57
    %466 = vmatpush.msra.mxu0 %v56
    %467 = vmatmul.f32.gmra.mxu0 %v449
    %v468 = vpop.f32.mrf.mxu0
    %v469 = vadd.f32 0.0, %v468
    %470 = vdwg.mxu0
    %v472 = vrot.slane %v469, 6
    %v474 = vadd.f32 %v96, %v472
    %v475 = vxor.u32 %v474, 2147483648
    %v476 = vmul.f32 %v475, 1.442695
    %v477 = vpow.pop %v476
    %v478 = vadd.f32 %v477, 1.0
    %v479 = vrcp.pop %v478
    %v480 = vmul.f32 %v478, %v479
    %v481 = vsub.f32 1.0, %v480
    %v482 = vmul.f32 %v479, %v481
    %v483 = vadd.f32 %v479, %v482
    %vm484 = vweird.f32 %v478
    %vm485 = vweird.f32 %v479
    %vm486 = vmor %vm484, %vm485
    %v487 = vsel %vm486, %v479, %v483
    %v488 = vand.u32 2147483647, %v478
    %vm489 = vcmp.eq.f32.partialorder %v488, 8.507059e+37
    %v490 = vand.u32 %v478, 2147483648
    %v491 = vor.u32 1.1754944e-38, %v490
    %v492 = vsel %vm489, %v491, %v487
    %v493 = vmul.f32 1.0, %v492
    %v494 = vtanh.pop %v474
    %v495 = vsel %vm102, %v494, %v493
    %v497 = vrot.slane %v439, 6
    %v499 = vmul.f32 %v495, %v497
    %501 = vrot.lane.b32.xlu0 %v495, 64
    %v502 = vpop.permute.xlu0 %501
    %v504 = vmul.f32 %v495, %v502
    %506 = vrot.lane.b32.xlu0 %v504, 32
    %v507 = vpop.permute.xlu0 %506
    %v509 = vadd.f32 %v499, %v507
    %v510 = vtanh.pop %v509
    %512 = vrot.lane.b32.xlu0 %v510, 64
    %v513 = vpop.permute.xlu0 %512
    %v515 = vmul.f32 %v495, %v513
    %v517 = vrot.slane %v515, 2
    %518 = vrot.lane.b32.xlu0 %v517, 32
    %v519 = vpop.permute.xlu0 %518
    %v520 = vsel %vm103, %v519, 0
    %522 = vmatpush.msra.mxu0 0.0
    %523 = vmatpush.msra.mxu0 0.0
    %524 = vmatpush.msra.mxu0 0.0
    %525 = vmatpush.msra.mxu0 0.0
    %526 = vmatpush.msra.mxu0 0.0
    %527 = vmatpush.msra.mxu0 0.0
    %528 = vmatpush.msra.mxu0 0.0
    %529 = vmatpush.msra.mxu0 0.0
    %530 = vmatpush.msra.mxu0 0.0
    %531 = vmatpush.msra.mxu0 0.0
    %532 = vmatpush.msra.mxu0 0.0
    %533 = vmatpush.msra.mxu0 0.0
    %534 = vmatpush.msra.mxu0 %v59
    %535 = vmatpush.msra.mxu0 %v58
    %536 = vmatpush.msra.mxu0 %v57
    %537 = vmatpush.msra.mxu0 %v56
    %538 = vmatmul.f32.gmra.mxu0 %v520
    %v539 = vpop.f32.mrf.mxu0
    %v540 = vadd.f32 0.0, %v539
    %541 = vdwg.mxu0
    %v543 = vrot.slane %v540, 4
    %v545 = vadd.f32 %v96, %v543
    %v546 = vxor.u32 %v545, 2147483648
    %v547 = vmul.f32 %v546, 1.442695
    %v548 = vpow.pop %v547
    %v549 = vadd.f32 %v548, 1.0
    %v550 = vrcp.pop %v549
    %v551 = vmul.f32 %v549, %v550
    %v552 = vsub.f32 1.0, %v551
    %v553 = vmul.f32 %v550, %v552
    %v554 = vadd.f32 %v550, %v553
    %vm555 = vweird.f32 %v549
    %vm556 = vweird.f32 %v550
    %vm557 = vmor %vm555, %vm556
    %v558 = vsel %vm557, %v550, %v554
    %v559 = vand.u32 2147483647, %v549
    %vm560 = vcmp.eq.f32.partialorder %v559, 8.507059e+37
    %v561 = vand.u32 %v549, 2147483648
    %v562 = vor.u32 1.1754944e-38, %v561
    %v563 = vsel %vm560, %v562, %v558
    %v564 = vmul.f32 1.0, %v563
    %v565 = vtanh.pop %v545
    %v566 = vsel %vm102, %v565, %v564
    %v568 = vrot.slane %v509, 6
    %v570 = vmul.f32 %v566, %v568
    %572 = vrot.lane.b32.xlu0 %v566, 64
    %v573 = vpop.permute.xlu0 %572
    %v575 = vmul.f32 %v566, %v573
    %577 = vrot.lane.b32.xlu0 %v575, 32
    %v578 = vpop.permute.xlu0 %577
    %v580 = vadd.f32 %v570, %v578
    %v581 = vtanh.pop %v580
    %583 = vrot.lane.b32.xlu0 %v581, 64
    %v584 = vpop.permute.xlu0 %583
    %v586 = vmul.f32 %v566, %v584
    %v588 = vrot.slane %v586, 4
    %589 = vrot.lane.b32.xlu0 %v588, 32
    %v590 = vpop.permute.xlu0 %589
    %v591 = vsel %vm103, %v590, 0
    %593 = vmatpush.msra.mxu0 0.0
    %594 = vmatpush.msra.mxu0 0.0
    %595 = vmatpush.msra.mxu0 0.0
    %596 = vmatpush.msra.mxu0 0.0
    %597 = vmatpush.msra.mxu0 0.0
    %598 = vmatpush.msra.mxu0 0.0
    %599 = vmatpush.msra.mxu0 0.0
    %600 = vmatpush.msra.mxu0 0.0
    %601 = vmatpush.msra.mxu0 0.0
    %602 = vmatpush.msra.mxu0 0.0
    %603 = vmatpush.msra.mxu0 0.0
    %604 = vmatpush.msra.mxu0 0.0
    %605 = vmatpush.msra.mxu0 %v59
    %606 = vmatpush.msra.mxu0 %v58
    %607 = vmatpush.msra.mxu0 %v57
    %608 = vmatpush.msra.mxu0 %v56
    %609 = vmatmul.f32.gmra.mxu0 %v591
    %v610 = vpop.f32.mrf.mxu0
    %v611 = vadd.f32 0.0, %v610
    %612 = vdwg.mxu0
    %v614 = vrot.slane %v611, 2
    %v616 = vadd.f32 %v96, %v614
    %v617 = vxor.u32 %v616, 2147483648
    %v618 = vmul.f32 %v617, 1.442695
    %v619 = vpow.pop %v618
    %v620 = vadd.f32 %v619, 1.0
    %v621 = vrcp.pop %v620
    %v622 = vmul.f32 %v620, %v621
    %v623 = vsub.f32 1.0, %v622
    %v624 = vmul.f32 %v621, %v623
    %v625 = vadd.f32 %v621, %v624
    %vm626 = vweird.f32 %v620
    %vm627 = vweird.f32 %v621
    %vm628 = vmor %vm626, %vm627
    %v629 = vsel %vm628, %v621, %v625
    %v630 = vand.u32 2147483647, %v620
    %vm631 = vcmp.eq.f32.partialorder %v630, 8.507059e+37
    %v632 = vand.u32 %v620, 2147483648
    %v633 = vor.u32 1.1754944e-38, %v632
    %v634 = vsel %vm631, %v633, %v629
    %v635 = vmul.f32 1.0, %v634
    %v636 = vtanh.pop %v616
    %v637 = vsel %vm102, %v636, %v635
    %v639 = vrot.slane %v580, 6
    %v641 = vmul.f32 %v637, %v639
    %643 = vrot.lane.b32.xlu0 %v637, 64
    %v644 = vpop.permute.xlu0 %643
    %v646 = vmul.f32 %v637, %v644
    %648 = vrot.lane.b32.xlu0 %v646, 32
    %v649 = vpop.permute.xlu0 %648
    %v651 = vadd.f32 %v641, %v649
    %v652 = vtanh.pop %v651
    %654 = vrot.lane.b32.xlu0 %v652, 64
    %v655 = vpop.permute.xlu0 %654
    %v657 = vmul.f32 %v637, %v655
    %v658 = vld [vmem:[%s4] sm:$0xff]
    %v659 = vld [vmem:[%s4 + $0x8] sm:$0xff]
    %v660 = vld [vmem:[%s4 + $0x10] sm:$0xff]
    %v661 = vld [vmem:[%s4 + $0x18] sm:$0xff]
    %v662 = vld [vmem:[%s5] sm:$0x1]
    %v664 = vperm.slane %v662, 0
    %v667 = vrot.slane %v657, 6
    %668 = vrot.lane.b32.xlu0 %v667, 32
    %v669 = vpop.permute.xlu0 %668
    %v670 = vsel %vm103, %v669, 0
    %672 = vmatpush.msra.mxu0 0.0
    %673 = vmatpush.msra.mxu0 0.0
    %674 = vmatpush.msra.mxu0 0.0
    %675 = vmatpush.msra.mxu0 0.0
    %676 = vmatpush.msra.mxu0 0.0
    %677 = vmatpush.msra.mxu0 0.0
    %678 = vmatpush.msra.mxu0 0.0
    %679 = vmatpush.msra.mxu0 0.0
    %680 = vmatpush.msra.mxu0 0.0
    %681 = vmatpush.msra.mxu0 0.0
    %682 = vmatpush.msra.mxu0 0.0
    %683 = vmatpush.msra.mxu0 0.0
    %684 = vmatpush.msra.mxu0 %v661
    %685 = vmatpush.msra.mxu0 %v660
    %686 = vmatpush.msra.mxu0 %v659
    %687 = vmatpush.msra.mxu0 %v658
    %688 = vmatmul.f32.gmra.mxu0 %v670
    %v689 = vpop.f32.mrf.mxu0
    %v690 = vadd.f32 %v664, %v689
    %691 = vdwg.mxu0
    %vm692 = vcmask 58368
    %693 = vst.msk [vmem:[#allocation7] sm:$0x3] %vm692, %v690
    // Predicated region
    $region34: #{tpu_custom_call.1} parent=1 // pred_check
      _
    $region35: #{tpu_custom_call.1} parent=1 // pred_check_branch
      %695 = sbr.rel (0) target = $region37
    $region36: #{tpu_custom_call.1} parent=1 // pred_region
      %697 = vsyncadd [#allocation4], 0
      %s699 = sshll.u32 [#allocation7], 4
      %s700 = int_to_ptr.vmem [resolvable:$true] %s699
      %s701 = sshll.u32 %s6, 4
      %s702 = int_to_ptr.hbm [resolvable:$true] %s701
      %704 = dma.vmem_to_hbm [thread:$0]  %s700, 32, %s702, [#allocation4]
    $region37: #{tpu_custom_call.1} parent=1 // pred_fallthru
      _
    // Predicated region
    $region38: #{tpu_custom_call.1} parent=1 // pred_check
      _
    $region39: #{tpu_custom_call.1} parent=1 // pred_check_branch
      %706 = sbr.rel (0) target = $region41
    $region40: #{tpu_custom_call.1} parent=1 // pred_region
      %708 = dma.done [#allocation4], 32
    $region41: #{tpu_custom_call.1} parent=1 // pred_fallthru
      _
    %709 = vsyncpa [#allocation3], 1
    %710 = vsyncpa [#allocation6], 1
    %711 = vsyncpa [#allocation4], 1

</llo_original>
